<compile_context>
chip_gen: v5e
topology: v5e:2x2
jax: 0.10.0
libtpu: 0.0.40
codegen_flags: <defaults>
</compile_context>

<pallas_src>
import numpy as np
import jax
import jax.numpy as jnp
from jax import lax
from jax.experimental import pallas as pl
from jax.experimental.pallas import tpu as pltpu

NEG_SLOPE = 0.2
L2_EPS = 1e-12  # F.normalize default eps


def _round_up(x, m):
    return ((x + m - 1) // m) * m


def _ngcf_dst_kernel(ids_ref, cnt_ref, xd_ref, a_ref, xs_ref, w_ref, b_ref,
                     out_ref, acc_ref, deg_ref):
    """One (dst-tile i, schedule-step t) grid step.

    acc_ref accumulates agg = A_tile @ X_S_tile (f32, MXU); deg_ref accumulates the A-tile
    row sums (f32, XLU). Steps past this dst tile's nonzero-block count are skipped. On
    the last step the fused projection + bias + LeakyReLU + L2-normalize epilogue runs and
    the lane-dense output tile is stored.
    """
    del ids_ref  # consumed only by the data-dependent index_maps
    i = pl.program_id(0)
    t = pl.program_id(1)

    @pl.when(t == 0)
    def _():
        acc_ref[...] = jnp.zeros_like(acc_ref)
        deg_ref[...] = jnp.zeros_like(deg_ref)

    @pl.when(t < cnt_ref[i])  # skip padded schedule steps (and fully-empty dst tiles)
    def _():
        a = a_ref[...]
        acc_ref[...] += jnp.dot(a, xs_ref[...], preferred_element_type=jnp.float32)
        deg_ref[...] += jnp.sum(a.astype(jnp.float32), axis=1, keepdims=True)

    @pl.when(t == pl.num_programs(1) - 1)
    def _():
        cdt = w_ref.dtype
        xd = xd_ref[...].astype(jnp.float32)    # (TM, Dpad)
        agg = acc_ref[...]                      # (TM, Dpad)
        deg = deg_ref[...]                      # (TM, 1)

        # Single fused projection: (xd+agg)@W1t + (agg*xd)@W2t.
        feat = jnp.concatenate([(xd + agg).astype(cdt), (agg * xd).astype(cdt)], axis=1)
        h = jnp.dot(feat, w_ref[...], preferred_element_type=jnp.float32)
        # + b1 (self loop) + deg*b1 + deg*b2 (cross edges); bias rows are f32.
        h = h + b_ref[0:1, :] + deg * b_ref[1:2, :]

        # LeakyReLU(0.2)
        h = jnp.where(h > 0, h, NEG_SLOPE * h)
        # TODO(synk): training-mode dropout (p>0) would need pltpu.prng_seed +
        # pltpu.stateful_bernoulli here; module is exercised in eval / p=0 -> identity.

        # h * rsqrt(max(sumsq, eps^2)) == h / max(||h||, eps)  (F.normalize). Keep the
        # max(): it also keeps all-zero padded rows finite. Padded output columns are
        # exactly zero, so they do not pollute the sum of squares.
        sumsq = jnp.sum(h * h, axis=1, keepdims=True)
        h = h * lax.rsqrt(jnp.maximum(sumsq, L2_EPS * L2_EPS))
        out_ref[...] = h.astype(out_ref.dtype)


def _block_schedule(a_norm, n_i, n_k, tile_m, tile_k):
    """Host-side block-CSR over (dst-tile, src-tile) pairs.

    Returns (flat block ids [n_i*T] int32, per-dst-tile counts [n_i] int32, T) with
    T = max nonzero src blocks over dst tiles. Padded entries repeat the last valid block
    id so the pipeline does not re-issue DMAs for them. Falls back to a dense schedule if
    a_norm is a tracer (wrapper used under jit).
    """
    try:
        a_host = np.asarray(jax.device_get(a_norm))
    except Exception:
        a_host = None
    if a_host is None:
        ids = np.tile(np.arange(n_k, dtype=np.int32), (n_i, 1))
        cnt = np.full((n_i,), n_k, dtype=np.int32)
        return jnp.asarray(ids.reshape(-1)), jnp.asarray(cnt), n_k

    occ = np.zeros((n_i, n_k), dtype=bool)
    r, c = np.nonzero(a_host)
    if r.size:
        occ[r // tile_m, c // tile_k] = True
    cnt = occ.sum(axis=1).astype(np.int32)
    T = max(1, int(cnt.max()))
    ids = np.zeros((n_i, T), dtype=np.int32)
    for i in range(n_i):
        nz = np.nonzero(occ[i])[0].astype(np.int32)
        if nz.size:
            ids[i, :nz.size] = nz
            ids[i, nz.size:] = nz[-1]
    return jnp.asarray(ids.reshape(-1)), jnp.asarray(cnt), T


def ngcf_dst_features(x_dst, x_src, a_norm, w1t, b1, w2t, b2, *,
                      tile_m=512, tile_k=2048,
                      compute_dtype=jnp.bfloat16, out_dtype=None):
    """NGCF output features for one destination node type.

    x_dst:  (n_dst, d_in)    destination node features
    x_src:  (n_src, d_in)    source node features
    a_norm: (n_dst, n_src)   dense edge-norm matrix (0 where there is no edge)
    w1t/w2t:(d_in, d_out)    pre-transposed weights;   b1/b2: (1, d_out)
    """
    n_dst, d_in = x_dst.shape
    n_src = x_src.shape[0]
    d_out = w1t.shape[1]
    f32 = jnp.float32
    out_dtype = compute_dtype if out_dtype is None else out_dtype

    # ---- padded, lane/sublane-friendly shapes ----------------------------------------
    SUB = 16                                    # sublane granularity (bf16-pack safe)
    d_in_pad = _round_up(max(d_in, 1), 128)     # no +1 ones column -> no 128->256 jump
    d_out_pad = _round_up(max(d_out, 1), 128)   # lane-dense output stores

    # dst tiles: keep >= 2 tiles whenever possible (the "parallel" axis feeds both
    # v7x TensorCores), otherwise as large as requested.
    half_dst = _round_up(max((n_dst + 1) // 2, SUB), SUB)
    tile_m = max(SUB, min(_round_up(tile_m, SUB), half_dst))
    n_dst_pad = _round_up(n_dst, tile_m)

    tile_k = max(128, min(_round_up(tile_k, 128), _round_up(n_src, 128)))
    n_src_pad = _round_up(n_src, tile_k)

    n_i = n_dst_pad // tile_m
    n_k = n_src_pad // tile_k

    blk_ids, blk_cnt, T = _block_schedule(a_norm, n_i, n_k, tile_m, tile_k)

    def pad2(x, rows, cols, dtype):
        return jnp.pad(x, ((0, rows - x.shape[0]), (0, cols - x.shape[1]))).astype(dtype)

    xd_p = pad2(x_dst, n_dst_pad, d_in_pad, compute_dtype)
    xs_p = pad2(x_src, n_src_pad, d_in_pad, compute_dtype)
    # TODO(synk): generation-gated 8-bit A (int8 on v5e/v6e, fp8-e4m3 on v7x) would halve
    # the dominant HBM stream; kept at compute_dtype pending an accuracy study.
    a_p = pad2(a_norm, n_dst_pad, n_src_pad, compute_dtype)
    # Pre-stacked weights for the single fused epilogue matmul: [W1t ; W2t].
    w_p = jnp.concatenate([pad2(w1t, d_in_pad, d_out_pad, f32),
                           pad2(w2t, d_in_pad, d_out_pad, f32)],
                          axis=0).astype(compute_dtype)
    # Bias rows (kept f32): row 0 = b1, row 1 = b1 + b2 (multiplied by deg in-kernel).
    bias_p = jnp.zeros((8, d_out_pad), f32)
    bias_p = bias_p.at[0, :d_out].set(b1.reshape(-1).astype(f32))
    bias_p = bias_p.at[1, :d_out].set((b1 + b2).reshape(-1).astype(f32))

    # Explicit scoped-VMEM budget: large default tiles would brush v5e's 16 MiB default;
    # stay comfortably under v7x's 64 MiB physical VMEM.
    cdb = np.dtype(compute_dtype).itemsize
    odb = np.dtype(out_dtype).itemsize
    vmem_est = (2 * tile_m * tile_k * cdb          # A tile (double buffered)
                + 2 * tile_k * d_in_pad * cdb      # X_S tile
                + 2 * tile_m * d_in_pad * cdb      # X_D tile
                + 2 * tile_m * d_out_pad * odb     # out tile
                + 2 * 2 * d_in_pad * d_out_pad * cdb + 2 * 8 * d_out_pad * 4  # W, bias
                + tile_m * d_in_pad * 4            # agg accumulator
                + tile_m * 128 * 4)                # deg accumulator (lane padded)
    vmem_limit = int(min(60 << 20, max(32 << 20, int(1.5 * vmem_est))))

    out = pl.pallas_call(
        _ngcf_dst_kernel,
        out_shape=jax.ShapeDtypeStruct((n_dst_pad, d_out_pad), out_dtype),
        grid_spec=pltpu.PrefetchScalarGridSpec(
            num_scalar_prefetch=2,                 # blk_ids, blk_cnt -> SMEM
            grid=(n_i, T),
            in_specs=[
                pl.BlockSpec((tile_m, d_in_pad), lambda i, t, ids, cnt: (i, 0)),   # X_D
                pl.BlockSpec((tile_m, tile_k),                                     # A
                             lambda i, t, ids, cnt: (i, ids[i * T + t])),
                pl.BlockSpec((tile_k, d_in_pad),                                   # X_S
                             lambda i, t, ids, cnt: (ids[i * T + t], 0)),
                pl.BlockSpec((2 * d_in_pad, d_out_pad),                            # [W1t;W2t]
                             lambda i, t, ids, cnt: (0, 0)),
                pl.BlockSpec((8, d_out_pad), lambda i, t, ids, cnt: (0, 0)),       # biases
            ],
            out_specs=pl.BlockSpec((tile_m, d_out_pad), lambda i, t, ids, cnt: (i, 0)),
            scratch_shapes=[pltpu.VMEM((tile_m, d_in_pad), jnp.float32),   # agg
                            pltpu.VMEM((tile_m, 1), jnp.float32)],          # deg
        ),
        compiler_params=pltpu.CompilerParams(
            # dst axis shards across TCs (v7x megacore); schedule axis is the reduction.
            dimension_semantics=("parallel", "arbitrary"),
            vmem_limit_bytes=vmem_limit,
        ),
    )(blk_ids, blk_cnt, xd_p, a_p, xs_p, w_p, bias_p)

    # TODO(synk): when n_src_pad*d_in_pad*itemsize fits the per-generation VMEM budget
    # (~80 MiB v5e/v6e, ~40 MiB v7x), X_S could be held resident (memory_space=pl.ANY +
    # one manual DMA) to remove the remaining per-dst-tile re-stream; needs a per-core
    # "first iteration" guard to stay correct under megacore sharding, so left out here.
    return out[:n_dst, :d_out]


def ngcf_layer_forward(feat_user, feat_item, norm_iu, norm_ui, params, **kwargs):
    """Full NGCFLayer.forward: returns {'user': h_user, 'item': h_item}.

    norm_iu: [n_item, n_user]  edge norms for user->item edges (dst=item)
    norm_ui: [n_user, n_item]  edge norms for item->user edges (dst=user)
    """
    w1t, b1, w2t, b2 = params
    h_item = ngcf_dst_features(feat_item, feat_user, norm_iu, w1t, b1, w2t, b2, **kwargs)
    h_user = ngcf_dst_features(feat_user, feat_item, norm_ui, w1t, b1, w2t, b2, **kwargs)
    return {"user": h_user, "item": h_item}


# -------------------------- reference + test problem builders --------------------------

def _reference_dst(x_dst, x_src, a, w1t, b1, w2t, b2):
    agg = a @ x_src
    deg = a.sum(axis=1, keepdims=True)
    h = (x_dst @ w1t + b1) + (agg @ w1t + deg * b1) + ((agg * x_dst) @ w2t + deg * b2)
    h = jnp.where(h > 0, h, NEG_SLOPE * h)
    nrm = jnp.sqrt(jnp.sum(h * h, axis=1, keepdims=True))
    return h / jnp.maximum(nrm, L2_EPS)


def _xavier_params(k_w1, k_w2, k_b1, k_b2, in_size, out_size):
    bound = (6.0 / (in_size + out_size)) ** 0.5
    w1 = jax.random.uniform(k_w1, (out_size, in_size), jnp.float32, -bound, bound)
    w2 = jax.random.uniform(k_w2, (out_size, in_size), jnp.float32, -bound, bound)
    # Module init zeroes biases; use small nonzero ones so the bias path is exercised.
    b1 = 0.05 * jax.random.normal(k_b1, (1, out_size), jnp.float32)
    b2 = 0.05 * jax.random.normal(k_b2, (1, out_size), jnp.float32)
    return (w1.T, b1, w2.T, b2)                 # pre-transposed: X @ Wt + b


def _make_problem(key, n_user, n_item, in_size, out_size, density=0.1):
    k_u, k_i, k_adj, k_w1, k_w2, k_b1, k_b2 = jax.random.split(key, 7)
    feat_user = jax.random.normal(k_u, (n_user, in_size), jnp.float32)
    feat_item = jax.random.normal(k_i, (n_item, in_size), jnp.float32)
    adj = (jax.random.uniform(k_adj, (n_item, n_user)) < density).astype(jnp.float32)
    deg_item = jnp.maximum(adj.sum(axis=1, keepdims=True), 1.0)
    deg_user = jnp.maximum(adj.sum(axis=0, keepdims=True), 1.0)
    norm_iu = adj / jnp.sqrt(deg_item * deg_user)   # dst=item, src=user
    norm_ui = norm_iu.T                             # dst=user, src=item
    params = _xavier_params(k_w1, k_w2, k_b1, k_b2, in_size, out_size)
    return feat_user, feat_item, norm_iu, norm_ui, params


def _make_structured_problem(key, in_size=64, out_size=64):
    """Block-structured graph: item tile 1 and user tile 1 have no incident edges, so the
    block-CSR schedule contains both empty (dst,src) tile pairs and whole dst tiles with
    zero nonzero blocks."""
    n_item, n_user = 256, 384
    k_u, k_i, k_adj, k_w1, k_w2, k_b1, k_b2 = jax.random.split(key, 7)
    feat_user = jax.random.normal(k_u, (n_user, in_size), jnp.float32)
    feat_item = jax.random.normal(k_i, (n_item, in_size), jnp.float32)
    rand = jax.random.uniform(k_adj, (n_item, n_user))
    block_mask = jnp.zeros((n_item, n_user), bool)
    block_mask = block_mask.at[:128, :128].set(True)     # item tile 0 <-> user tile 0
    block_mask = block_mask.at[:128, 256:].set(True)     # item tile 0 <-> user tile 2
    adj = jnp.where(block_mask & (rand < 0.2), 1.0, 0.0)
    deg_item = jnp.maximum(adj.sum(axis=1, keepdims=True), 1.0)
    deg_user = jnp.maximum(adj.sum(axis=0, keepdims=True), 1.0)
    norm_iu = adj / jnp.sqrt(deg_item * deg_user)
    norm_ui = norm_iu.T
    params = _xavier_params(k_w1, k_w2, k_b1, k_b2, in_size, out_size)
    return feat_user, feat_item, norm_iu, norm_ui, params


if __name__ == "__main__":
    key = jax.random.PRNGKey(0)
    k1, k2, k3 = jax.random.split(key, 3)

    # Case 1: small problem, default (auto-clamped) tiles, f32 MXU operands -> tight check.
    fu, fi, niu, nui, params = _make_problem(k1, n_user=64, n_item=96,
                                             in_size=32, out_size=32)
    out = ngcf_layer_forward(fu, fi, niu, nui, params, compute_dtype=jnp.float32)
    out = jax.tree_util.tree_map(jax.block_until_ready, out)
    assert jnp.allclose(out["item"], _reference_dst(fi, fu, niu, *params), atol=5e-5, rtol=5e-5)
    assert jnp.allclose(out["user"], _reference_dst(fu, fi, nui, *params), atol=5e-5, rtol=5e-5)

    # Case 2: multi-tile grid (dst and src tails padded) + bf16 operands and bf16 output.
    fu, fi, niu, nui, params = _make_problem(k2, n_user=200, n_item=312,
                                             in_size=48, out_size=40)
    out = ngcf_layer_forward(fu, fi, niu, nui, params, tile_m=128, tile_k=128,
                             compute_dtype=jnp.bfloat16)
    out = jax.tree_util.tree_map(jax.block_until_ready, out)
    assert jnp.allclose(out["item"].astype(jnp.float32), _reference_dst(fi, fu, niu, *params),
                        atol=3e-2, rtol=3e-2)
    assert jnp.allclose(out["user"].astype(jnp.float32), _reference_dst(fu, fi, nui, *params),
                        atol=3e-2, rtol=3e-2)

    # Case 3: structured-sparse graph -> exercises block skipping (empty src tiles and
    # dst tiles with zero nonzero blocks). f32 compute for a tight correctness check.
    fu, fi, niu, nui, params = _make_structured_problem(k3, in_size=64, out_size=64)
    out = ngcf_layer_forward(fu, fi, niu, nui, params, tile_m=128, tile_k=128,
                             compute_dtype=jnp.float32)
    out = jax.tree_util.tree_map(jax.block_until_ready, out)
    assert jnp.allclose(out["item"], _reference_dst(fi, fu, niu, *params), atol=5e-5, rtol=5e-5)
    assert jnp.allclose(out["user"], _reference_dst(fu, fi, nui, *params), atol=5e-5, rtol=5e-5)

    print("KERNEL_OK")
</pallas_src>

<mosaic_0001>
module attributes {stable_mosaic.version = 11 : i64} {
  func.func @_ngcf_dst_kernel(%arg0: i32, %arg1: i32, %arg2: memref<2xi32, #tpu.memory_space<smem>>, %arg3: memref<2xi32, #tpu.memory_space<smem>>, %arg4: memref<48x128xf32, #tpu.memory_space<vmem>>, %arg5: memref<48x128xf32, #tpu.memory_space<vmem>>, %arg6: memref<128x128xf32, #tpu.memory_space<vmem>>, %arg7: memref<256x128xf32, #tpu.memory_space<vmem>>, %arg8: memref<8x128xf32, #tpu.memory_space<vmem>>, %arg9: memref<48x128xf32, #tpu.memory_space<vmem>>, %arg10: memref<48x128xf32, #tpu.memory_space<vmem>>, %arg11: memref<48x1xf32, #tpu.memory_space<vmem>>) attributes {dimension_semantics = [#tpu.dimension_semantics<parallel>, #tpu.dimension_semantics<arbitrary>], iteration_bounds = array<i64: 2, 1>, scalar_prefetch = 2 : i64, scratch_operands = 2 : i64, tpu.core_type = #tpu.core_type<tc>, window_params = [{transform_indices = @transform_0, window_bounds = array<i64: 48, 128>}, {transform_indices = @transform_1, window_bounds = array<i64: 48, 128>}, {transform_indices = @transform_2, window_bounds = array<i64: 128, 128>}, {pipeline_mode = #tpu.pipeline_mode<synchronous>, transform_indices = @transform_3, window_bounds = array<i64: 256, 128>}, {pipeline_mode = #tpu.pipeline_mode<synchronous>, transform_indices = @transform_4, window_bounds = array<i64: 8, 128>}, {transform_indices = @transform_5, window_bounds = array<i64: 48, 128>}]} {
    %c0_i32 = arith.constant 0 : i32
    %0 = arith.cmpi eq, %arg1, %c0_i32 : i32
    %1 = arith.extui %0 : i1 to i32
    %c0_i32_0 = arith.constant 0 : i32
    %2 = arith.cmpi ne, %1, %c0_i32_0 : i32
    scf.if %2 {
      %cst = arith.constant 0.000000e+00 : f32
      %11 = vector.broadcast %cst : f32 to vector<48x128xf32>
      %c0 = arith.constant 0 : index
      %c0_4 = arith.constant 0 : index
      %12 = vector.load %arg10[%c0, %c0_4] : memref<48x128xf32, #tpu.memory_space<vmem>>, vector<48x128xf32>
      tpu.vector_store %arg10[%c0, %c0_4], %11 {strides = array<i32>} : memref<48x128xf32, #tpu.memory_space<vmem>>, vector<48x128xf32>,
      %cst_5 = arith.constant 0.000000e+00 : f32
      %13 = vector.broadcast %cst_5 : f32 to vector<48x1xf32>
      %c0_6 = arith.constant 0 : index
      %c0_7 = arith.constant 0 : index
      %14 = vector.load %arg11[%c0_6, %c0_7] : memref<48x1xf32, #tpu.memory_space<vmem>>, vector<48x1xf32>
      tpu.vector_store %arg11[%c0_6, %c0_7], %13 {strides = array<i32>} : memref<48x1xf32, #tpu.memory_space<vmem>>, vector<48x1xf32>,
    } else {
    }
    %3 = arith.index_cast %arg0 : i32 to index
    %4 = memref.load %arg3[%3] : memref<2xi32, #tpu.memory_space<smem>>
    %5 = arith.cmpi slt, %arg1, %4 : i32
    %6 = arith.extui %5 : i1 to i32
    %c0_i32_1 = arith.constant 0 : i32
    %7 = arith.cmpi ne, %6, %c0_i32_1 : i32
    scf.if %7 {
      %c0 = arith.constant 0 : index
      %c0_4 = arith.constant 0 : index
      %11 = vector.load %arg5[%c0, %c0_4] : memref<48x128xf32, #tpu.memory_space<vmem>>, vector<48x128xf32>
      %c0_5 = arith.constant 0 : index
      %c0_6 = arith.constant 0 : index
      %12 = vector.load %arg10[%c0_5, %c0_6] : memref<48x128xf32, #tpu.memory_space<vmem>>, vector<48x128xf32>
      %c0_7 = arith.constant 0 : index
      %c0_8 = arith.constant 0 : index
      %13 = vector.load %arg6[%c0_7, %c0_8] : memref<128x128xf32, #tpu.memory_space<vmem>>, vector<128x128xf32>
      %cst = arith.constant dense<0.000000e+00> : vector<48x128xf32>
      %14 = tpu.matmul %11, %13, %cst {dimension_numbers = #tpu.dot_dimension_numbers<[1], [0], [0], [1], [0, 0, 1, 1], [], []>} : vector<48x128xf32>, vector<128x128xf32>, vector<48x128xf32> -> vector<48x128xf32>
      %15 = arith.addf %12, %14 : vector<48x128xf32>
      %c0_9 = arith.constant 0 : index
      %c0_10 = arith.constant 0 : index
      %16 = vector.load %arg10[%c0_9, %c0_10] : memref<48x128xf32, #tpu.memory_space<vmem>>, vector<48x128xf32>
      tpu.vector_store %arg10[%c0_9, %c0_10], %15 {strides = array<i32>} : memref<48x128xf32, #tpu.memory_space<vmem>>, vector<48x128xf32>,
      %c0_11 = arith.constant 0 : index
      %c0_12 = arith.constant 0 : index
      %17 = vector.load %arg11[%c0_11, %c0_12] : memref<48x1xf32, #tpu.memory_space<vmem>>, vector<48x1xf32>
      %cst_13 = arith.constant dense<0.000000e+00> : vector<48xf32>
      %18 = vector.multi_reduction <add>, %11, %cst_13 [1] : vector<48x128xf32> to vector<48xf32>
      %19 = vector.shape_cast %18 : vector<48xf32> to vector<48x1xf32>
      %20 = arith.addf %17, %19 : vector<48x1xf32>
      %c0_14 = arith.constant 0 : index
      %c0_15 = arith.constant 0 : index
      %21 = vector.load %arg11[%c0_14, %c0_15] : memref<48x1xf32, #tpu.memory_space<vmem>>, vector<48x1xf32>
      tpu.vector_store %arg11[%c0_14, %c0_15], %20 {strides = array<i32>} : memref<48x1xf32, #tpu.memory_space<vmem>>, vector<48x1xf32>,
    } else {
    }
    %c0_i32_2 = arith.constant 0 : i32
    %8 = arith.cmpi eq, %arg1, %c0_i32_2 : i32
    %9 = arith.extui %8 : i1 to i32
    %c0_i32_3 = arith.constant 0 : i32
    %10 = arith.cmpi ne, %9, %c0_i32_3 : i32
    scf.if %10 {
      %c0 = arith.constant 0 : index
      %c0_4 = arith.constant 0 : index
      %11 = vector.load %arg4[%c0, %c0_4] : memref<48x128xf32, #tpu.memory_space<vmem>>, vector<48x128xf32>
      %c0_5 = arith.constant 0 : index
      %c0_6 = arith.constant 0 : index
      %12 = vector.load %arg10[%c0_5, %c0_6] : memref<48x128xf32, #tpu.memory_space<vmem>>, vector<48x128xf32>
      %c0_7 = arith.constant 0 : index
      %c0_8 = arith.constant 0 : index
      %13 = vector.load %arg11[%c0_7, %c0_8] : memref<48x1xf32, #tpu.memory_space<vmem>>, vector<48x1xf32>
      %14 = arith.addf %11, %12 : vector<48x128xf32>
      %15 = arith.mulf %12, %11 : vector<48x128xf32>
      %16 = tpu.concatenate %14, %15 in 1 : vector<48x128xf32>, vector<48x128xf32> -> vector<48x256xf32>
      %c0_9 = arith.constant 0 : index
      %c0_10 = arith.constant 0 : index
      %17 = vector.load %arg7[%c0_9, %c0_10] : memref<256x128xf32, #tpu.memory_space<vmem>>, vector<256x128xf32>
      %cst = arith.constant dense<0.000000e+00> : vector<48x128xf32>
      %18 = tpu.matmul %16, %17, %cst {dimension_numbers = #tpu.dot_dimension_numbers<[1], [0], [0], [1], [0, 0, 1, 1], [], []>} : vector<48x256xf32>, vector<256x128xf32>, vector<48x128xf32> -> vector<48x128xf32>
      %c0_11 = arith.constant 0 : index
      %c0_12 = arith.constant 0 : index
      %19 = vector.load %arg8[%c0_11, %c0_12] : memref<8x128xf32, #tpu.memory_space<vmem>>, vector<1x128xf32>
      %20 = vector.broadcast %19 : vector<1x128xf32> to vector<48x128xf32>
      %21 = arith.addf %18, %20 : vector<48x128xf32>
      %c1 = arith.constant 1 : index
      %c0_13 = arith.constant 0 : index
      %22 = vector.load %arg8[%c1, %c0_13] : memref<8x128xf32, #tpu.memory_space<vmem>>, vector<1x128xf32>
      %23 = vector.broadcast %13 : vector<48x1xf32> to vector<48x128xf32>
      %24 = vector.broadcast %22 : vector<1x128xf32> to vector<48x128xf32>
      %25 = arith.mulf %23, %24 : vector<48x128xf32>
      %26 = arith.addf %21, %25 : vector<48x128xf32>
      %cst_14 = arith.constant 0.000000e+00 : f32
      %27 = vector.broadcast %cst_14 : f32 to vector<48x128xf32>
      %28 = arith.cmpf ogt, %26, %27 : vector<48x128xf32>
      %cst_15 = arith.constant 2.000000e-01 : f32
      %29 = vector.broadcast %cst_15 : f32 to vector<48x128xf32>
      %30 = arith.mulf %29, %26 : vector<48x128xf32>
      %31 = arith.select %28, %26, %30 : vector<48x128xi1>, vector<48x128xf32>
      %32 = arith.mulf %31, %31 : vector<48x128xf32>
      %cst_16 = arith.constant dense<0.000000e+00> : vector<48xf32>
      %33 = vector.multi_reduction <add>, %32, %cst_16 [1] : vector<48x128xf32> to vector<48xf32>
      %34 = vector.shape_cast %33 : vector<48xf32> to vector<48x1xf32>
      %cst_17 = arith.constant 1.000000e-24 : f32
      %35 = vector.broadcast %cst_17 : f32 to vector<48x1xf32>
      %36 = arith.maximumf %34, %35 : vector<48x1xf32>
      %37 = math.rsqrt %36 : vector<48x1xf32>
      %38 = vector.broadcast %37 : vector<48x1xf32> to vector<48x128xf32>
      %39 = arith.mulf %31, %38 : vector<48x128xf32>
      %c0_18 = arith.constant 0 : index
      %c0_19 = arith.constant 0 : index
      %40 = vector.load %arg9[%c0_18, %c0_19] : memref<48x128xf32, #tpu.memory_space<vmem>>, vector<48x128xf32>
      tpu.vector_store %arg9[%c0_18, %c0_19], %39 {strides = array<i32>} : memref<48x128xf32, #tpu.memory_space<vmem>>, vector<48x128xf32>,
    } else {
    }
    return
  }
  func.func @transform_0(%arg0: i32, %arg1: i32, %arg2: memref<2xi32, #tpu.memory_space<smem>>, %arg3: memref<2xi32, #tpu.memory_space<smem>>) -> (i32, i32) {
    %c0_i32 = arith.constant 0 : i32
    %c0_i32_0 = arith.constant 0 : i32
    return %arg0, %c0_i32 : i32, i32
  }
  func.func @transform_1(%arg0: i32, %arg1: i32, %arg2: memref<2xi32, #tpu.memory_space<smem>>, %arg3: memref<2xi32, #tpu.memory_space<smem>>) -> (i32, i32) {
    %c1_i32 = arith.constant 1 : i32
    %0 = arith.muli %arg0, %c1_i32 : i32
    %1 = arith.addi %0, %arg1 : i32
    %2 = arith.index_cast %1 : i32 to index
    %3 = memref.load %arg2[%2] : memref<2xi32, #tpu.memory_space<smem>>
    %c0_i32 = arith.constant 0 : i32
    return %arg0, %3 : i32, i32
  }
  func.func @transform_2(%arg0: i32, %arg1: i32, %arg2: memref<2xi32, #tpu.memory_space<smem>>, %arg3: memref<2xi32, #tpu.memory_space<smem>>) -> (i32, i32) {
    %c1_i32 = arith.constant 1 : i32
    %0 = arith.muli %arg0, %c1_i32 : i32
    %1 = arith.addi %0, %arg1 : i32
    %2 = arith.index_cast %1 : i32 to index
    %3 = memref.load %arg2[%2] : memref<2xi32, #tpu.memory_space<smem>>
    %c0_i32 = arith.constant 0 : i32
    %c0_i32_0 = arith.constant 0 : i32
    return %3, %c0_i32 : i32, i32
  }
  func.func @transform_3(%arg0: i32, %arg1: i32, %arg2: memref<2xi32, #tpu.memory_space<smem>>, %arg3: memref<2xi32, #tpu.memory_space<smem>>) -> (i32, i32) {
    %c0_i32 = arith.constant 0 : i32
    %c0_i32_0 = arith.constant 0 : i32
    %c0_i32_1 = arith.constant 0 : i32
    return %c0_i32, %c0_i32_0 : i32, i32
  }
  func.func @transform_4(%arg0: i32, %arg1: i32, %arg2: memref<2xi32, #tpu.memory_space<smem>>, %arg3: memref<2xi32, #tpu.memory_space<smem>>) -> (i32, i32) {
    %c0_i32 = arith.constant 0 : i32
    %c0_i32_0 = arith.constant 0 : i32
    %c0_i32_1 = arith.constant 0 : i32
    return %c0_i32, %c0_i32_0 : i32, i32
  }
  func.func @transform_5(%arg0: i32, %arg1: i32, %arg2: memref<2xi32, #tpu.memory_space<smem>>, %arg3: memref<2xi32, #tpu.memory_space<smem>>) -> (i32, i32) {
    %c0_i32 = arith.constant 0 : i32
    %c0_i32_0 = arith.constant 0 : i32
    return %arg0, %c0_i32 : i32, i32
  }
}

</mosaic_0001>

<llo_original>
// kernel: tpu_custom_call.1
$region0: #{tpu_custom_call.1}
  #allocation0 [shape = 'u32[]', space=smem, size = 0x4, offset = 0x4, fixed_abs, tag = 'smem constant byte address 0x4 - core index']
  #allocation1 [shape = 'u32[72,128]{1,0:T(1,128)}', space=vmem, size = 0x9000, scoped, tag = 'internal scratch']
  #allocation2 [shape = 'f32[48,128]{1,0:T(8,128)}', space=vmem, size = 0x6000, scoped, tag = 'scratch operand']
  #allocation3 [shape = 'f32[48,1]{1,0:T(8,128)}', space=vmem, size = 0x6000, scoped, tag = 'scratch operand']
  #allocation4 [shape = 's32[1]{0}', space=sflag, size = 0x4, scoped, tag = 'scoped memory for tpu_custom_call.1']
  #allocation5 [shape = 'u8[512]{0}', space=smem, size = 0x200, scoped, tag = 'prefetched SMEM operand 0']
  #allocation6 [shape = 'u8[512]{0}', space=smem, size = 0x200, scoped, tag = 'prefetched SMEM operand 1']
  %s0 = inlined_call_operand.hbm [shape: s32[2], index: 0, kind: input, shape index: {}]
  %s1 = inlined_call_operand.hbm [shape: s32[2], index: 1, kind: input, shape index: {}]
  %s2 = inlined_call_operand.hbm [shape: f32[96,128], index: 2, kind: input, shape index: {}]
  %s3 = inlined_call_operand.hbm [shape: f32[96,128], index: 3, kind: input, shape index: {}]
  %s4 = inlined_call_operand.hbm [shape: f32[128,128], index: 4, kind: input, shape index: {}]
  %s5 = inlined_call_operand.hbm [shape: f32[256,128], index: 5, kind: input, shape index: {}]
  %s6 = inlined_call_operand.hbm [shape: f32[8,128], index: 6, kind: input, shape index: {}]
  %s7 = inlined_call_operand.hbm [shape: f32[96,128], index: 7, kind: output, shape index: {}]
  %s8 = sld [smem:[#allocation0]]
  $region85: #{tpu_custom_call.1} parent=0
    _
  %s10 = ssub.s32 1, %s8
  %s11 = scalar_select 0, %s10, %s8
  %s13 = sshll.u32 %s0, 4
  %s14 = int_to_ptr.hbm [resolvable:$true] %s13
  %16 = dma.hbm_to_smem %s14, 16, [#allocation5], [#allocation4]
  %s18 = sshll.u32 %s1, 4
  %s19 = int_to_ptr.hbm [resolvable:$true] %s18
  %21 = dma.hbm_to_smem %s19, 16, [#allocation6], [#allocation4]
  %23 = dma.done [#allocation4], 32
  %24 = sfence
  $region1: #{tpu_custom_call.1} parent=0
    #allocation7 [shape = 'u8[49152]{0}', space=vmem, size = 0xc000, scoped, tag = 'input window, operand 2']
    #allocation8 [shape = 's32[2]{0}', space=sflag, size = 0x8, scoped, tag = 'scoped memory for tpu_custom_call.1']
    #allocation9 [shape = 's32[2]{0}', space=sflag, size = 0x8, scoped, tag = 'scoped memory for tpu_custom_call.1']
    #allocation10 [shape = 'u8[49152]{0}', space=vmem, size = 0xc000, scoped, tag = 'input window, operand 3']
    #allocation11 [shape = 's32[2]{0}', space=sflag, size = 0x8, scoped, tag = 'scoped memory for tpu_custom_call.1']
    #allocation12 [shape = 'u8[131072]{0}', space=vmem, size = 0x20000, scoped, tag = 'input window, operand 4']
    #allocation13 [shape = 'u8[131072]{0}', space=vmem, size = 0x20000, scoped, tag = 'input window, operand 5, single buffered']
    #allocation14 [shape = 's32[1]{0}', space=sflag, size = 0x4, scoped, tag = 'scoped memory for tpu_custom_call.1']
    #allocation15 [shape = 'u8[4096]{0}', space=vmem, size = 0x1000, scoped, tag = 'input window, operand 6, single buffered']
    #allocation16 [shape = 'u8[49152]{0}', space=vmem, size = 0xc000, scoped, tag = 'output window, operand 0']
    %25 = vsyncpa [#allocation8], 0
    %s26 = scalar_lea.sflag [#allocation8], 1
    %27 = vsyncpa %s26, 0
    %28 = vsyncpa [#allocation11], 0
    %s29 = scalar_lea.sflag [#allocation11], 1
    %30 = vsyncpa %s29, 0
    %31 = vsyncpa [#allocation14], 0
    %32 = vsyncpa [#allocation9], 0
    %s33 = scalar_lea.sflag [#allocation9], 1
    %34 = vsyncpa %s33, 0
    loop: start=0, step=1, limit=4
    $region2: #{tpu_custom_call.1} parent=1 // loop_pre_header
      _
    $region3: #{tpu_custom_call.1} parent=1 // loop_header
      %s36 = sphi 0, %s40
      %p37 = scmp.ge.s32.totalorder %s36, 4
      %s43 = sphi 0, %s55
      %s44 = sphi 0, %s51
      %s45 = sphi 0, %s43
      %s46 = sphi 0, %s44
      %s47 = sphi 0, %s45
      %s48 = sphi 0, %s46
      %s58 = sphi 0, %s60
      %s61 = sphi 0, %s58
      %s62 = sphi 0, %s61
      %s78 = sphi 0, %s62
      %s90 = sphi 0, %s92
      %s93 = sphi 0, %s90
      %s94 = sphi 0, %s93
      %s110 = sphi 0, %s94
      %s120 = sphi 0, %s122
      %s123 = sphi 0, %s120
      %s124 = sphi 0, %s123
      %s140 = sphi 0, %s124
      %s144 = sphi 0, %s144
      %s146 = sphi 0, %s144
      %s147 = sphi 0, %s146
      %s161 = sphi 0, %s147
      %s165 = sphi 0, %s165
      %s167 = sphi 0, %s165
      %s168 = sphi 0, %s167
      %s182 = sphi 0, %s168
      %s188 = sphi 0, %s190
      %s191 = sphi 0, %s188
      %s192 = sphi 0, %s191
      %s208 = sphi 0, %s192
    $region4: #{tpu_custom_call.1} parent=1 // loop_header_branch
      %39 = sbr.rel (%p37) target = $region8
    $region5: #{tpu_custom_call.1} parent=1 // loop_body
      %s41 = ssub.s32 %s36, 1
      %s42 = ssub.s32 %s36, 2
      %s49 = sadd.s32 1, %s44
      %p50 = scmp.ge.s32.totalorder %s49, 1
      %s51 = scalar_select %p50, 0, %s49
      %s52 = sadd.s32 1, %s43
      %s53 = scalar_select %p50, %s52, %s43
      %p54 = scmp.ge.s32.totalorder %s53, 2
      %s55 = scalar_select %p54, 0, %s53
      %s56 = ssub.s32 %s43, %s55
      %p57 = scmp.eq.s32.totalorder %s56, 0
      %s59 = sadd.s32 %s58, 1
      %s60 = scalar_select %p57, %s58, %s59
      %p63 = pneg %p57
      %p64 = scmp.eq.s32.totalorder %s36, 1
      %p65 = por %p63, %p64
      %p66 = scmp.ne.s32.totalorder %s58, %s61
      %p67 = scmp.eq.s32.totalorder %s36, 0
      %p68 = por %p66, %p67
      %p69 = scmp.ne.s32.totalorder %s58, %s61
      %p70 = scmp.eq.s32.totalorder %s41, 1
      %p71 = por %p69, %p70
      %p72 = scmp.ne.s32.totalorder %s61, %s62
      %p73 = scmp.eq.s32.totalorder %s41, 0
      %p74 = por %p72, %p73
      %p75 = scmp.ne.s32.totalorder %s61, %s62
      %p76 = scmp.eq.s32.totalorder %s42, 1
      %p77 = por %p75, %p76
      %p79 = scmp.ne.s32.totalorder %s62, %s78
      %p80 = scmp.eq.s32.totalorder %s42, 0
      %p81 = por %p79, %p80
      %s82 = sadd.s32 %s43, %s44
      %s83 = sld [smem:[#allocation5 + %s82]]
      %s84 = sadd.s32 %s55, %s51
      %s85 = sld [smem:[#allocation5 + %s84]]
      %s86 = ssub.s32 %s43, %s55
      %s87 = ssub.s32 %s83, %s85
      %s88 = sor.u32 %s86, %s87
      %p89 = scmp.eq.s32.totalorder %s88, 0
      %s91 = sadd.s32 %s90, 1
      %s92 = scalar_select %p89, %s90, %s91
      %p95 = pneg %p89
      %p96 = scmp.eq.s32.totalorder %s36, 1
      %p97 = por %p95, %p96
      %p98 = scmp.ne.s32.totalorder %s90, %s93
      %p99 = scmp.eq.s32.totalorder %s36, 0
      %p100 = por %p98, %p99
      %p101 = scmp.ne.s32.totalorder %s90, %s93
      %p102 = scmp.eq.s32.totalorder %s41, 1
      %p103 = por %p101, %p102
      %p104 = scmp.ne.s32.totalorder %s93, %s94
      %p105 = scmp.eq.s32.totalorder %s41, 0
      %p106 = por %p104, %p105
      %p107 = scmp.ne.s32.totalorder %s93, %s94
      %p108 = scmp.eq.s32.totalorder %s42, 1
      %p109 = por %p107, %p108
      %p111 = scmp.ne.s32.totalorder %s94, %s110
      %p112 = scmp.eq.s32.totalorder %s42, 0
      %p113 = por %p111, %p112
      %s114 = sadd.s32 %s43, %s44
      %s115 = sld [smem:[#allocation5 + %s114]]
      %s116 = sadd.s32 %s55, %s51
      %s117 = sld [smem:[#allocation5 + %s116]]
      %s118 = ssub.s32 %s115, %s117
      %p119 = scmp.eq.s32.totalorder %s118, 0
      %s121 = sadd.s32 %s120, 1
      %s122 = scalar_select %p119, %s120, %s121
      %p125 = pneg %p119
      %p126 = scmp.eq.s32.totalorder %s36, 1
      %p127 = por %p125, %p126
      %p128 = scmp.ne.s32.totalorder %s120, %s123
      %p129 = scmp.eq.s32.totalorder %s36, 0
      %p130 = por %p128, %p129
      %p131 = scmp.ne.s32.totalorder %s120, %s123
      %p132 = scmp.eq.s32.totalorder %s41, 1
      %p133 = por %p131, %p132
      %p134 = scmp.ne.s32.totalorder %s123, %s124
      %p135 = scmp.eq.s32.totalorder %s41, 0
      %p136 = por %p134, %p135
      %p137 = scmp.ne.s32.totalorder %s123, %s124
      %p138 = scmp.eq.s32.totalorder %s42, 1
      %p139 = por %p137, %p138
      %p141 = scmp.ne.s32.totalorder %s124, %s140
      %p142 = scmp.eq.s32.totalorder %s42, 0
      %p143 = por %p141, %p142
      %s145 = sadd.s32 %s144, 1
      %p148 = scmp.eq.s32.totalorder %s36, 1
      %p149 = scmp.ne.s32.totalorder %s144, %s146
      %p150 = scmp.eq.s32.totalorder %s36, 0
      %p151 = por %p149, %p150
      %p152 = scmp.ne.s32.totalorder %s144, %s146
      %p153 = scmp.eq.s32.totalorder %s41, 1
      %p154 = por %p152, %p153
      %p155 = scmp.ne.s32.totalorder %s146, %s147
      %p156 = scmp.eq.s32.totalorder %s41, 0
      %p157 = por %p155, %p156
      %p158 = scmp.ne.s32.totalorder %s146, %s147
      %p159 = scmp.eq.s32.totalorder %s42, 1
      %p160 = por %p158, %p159
      %p162 = scmp.ne.s32.totalorder %s147, %s161
      %p163 = scmp.eq.s32.totalorder %s42, 0
      %p164 = por %p162, %p163
      %s166 = sadd.s32 %s165, 1
      %p169 = scmp.eq.s32.totalorder %s36, 1
      %p170 = scmp.ne.s32.totalorder %s165, %s167
      %p171 = scmp.eq.s32.totalorder %s36, 0
      %p172 = por %p170, %p171
      %p173 = scmp.ne.s32.totalorder %s165, %s167
      %p174 = scmp.eq.s32.totalorder %s41, 1
      %p175 = por %p173, %p174
      %p176 = scmp.ne.s32.totalorder %s167, %s168
      %p177 = scmp.eq.s32.totalorder %s41, 0
      %p178 = por %p176, %p177
      %p179 = scmp.ne.s32.totalorder %s167, %s168
      %p180 = scmp.eq.s32.totalorder %s42, 1
      %p181 = por %p179, %p180
      %p183 = scmp.ne.s32.totalorder %s168, %s182
      %p184 = scmp.eq.s32.totalorder %s42, 0
      %p185 = por %p183, %p184
      %s186 = ssub.s32 %s43, %s55
      %p187 = scmp.eq.s32.totalorder %s186, 0
      %s189 = sadd.s32 %s188, 1
      %s190 = scalar_select %p187, %s188, %s189
      %p193 = pneg %p187
      %p194 = scmp.eq.s32.totalorder %s36, 1
      %p195 = por %p193, %p194
      %p196 = scmp.ne.s32.totalorder %s188, %s191
      %p197 = scmp.eq.s32.totalorder %s36, 0
      %p198 = por %p196, %p197
      %p199 = scmp.ne.s32.totalorder %s188, %s191
      %p200 = scmp.eq.s32.totalorder %s41, 1
      %p201 = por %p199, %p200
      %p202 = scmp.ne.s32.totalorder %s191, %s192
      %p203 = scmp.eq.s32.totalorder %s41, 0
      %p204 = por %p202, %p203
      %p205 = scmp.ne.s32.totalorder %s191, %s192
      %p206 = scmp.eq.s32.totalorder %s42, 1
      %p207 = por %p205, %p206
      %p209 = scmp.ne.s32.totalorder %s192, %s208
      %p210 = scmp.eq.s32.totalorder %s42, 0
      %p211 = por %p209, %p210
      %p212 = scmp.le.s32.totalorder 1, %s36
      %p213 = scmp.lt.s32.totalorder %s36, 3
      %p214 = pnand %p212, %p213
      %p215 = pneg %p214
      // Predicated region
      $region9: #{tpu_custom_call.1} parent=5 // pred_check
        _
      $region10: #{tpu_custom_call.1} parent=5 // pred_check_branch
        %217 = sbr.rel (%p214) target = $region12
      $region11: #{tpu_custom_call.1} parent=5 // pred_region
        %s218 = ssub.s32 %s36, 1
        // Predicated region
        $region13: #{tpu_custom_call.1} parent=11 // pred_check
          %p219 = pneg %p157
        $region14: #{tpu_custom_call.1} parent=11 // pred_check_branch
          %221 = sbr.rel (%p219) target = $region16
        $region15: #{tpu_custom_call.1} parent=11 // pred_region
          %223 = vsyncadd [#allocation14], 0
          %s224 = sshll.u32 %s5, 4
          %s225 = int_to_ptr.hbm [resolvable:$true] %s224
          %s226 = sshll.u32 [#allocation13], 4
          %s227 = int_to_ptr.vmem [resolvable:$true] %s226
          %232 = dma.hbm_to_vmem [thread:$0]  %s225, 4096, %s227, [#allocation14], 128, 128, 8
        $region16: #{tpu_custom_call.1} parent=11 // pred_fallthru
          _
        // Predicated region
        $region17: #{tpu_custom_call.1} parent=11 // pred_check
          %p233 = pneg %p178
        $region18: #{tpu_custom_call.1} parent=11 // pred_check_branch
          %235 = sbr.rel (%p233) target = $region20
        $region19: #{tpu_custom_call.1} parent=11 // pred_region
          %237 = vsyncadd [#allocation14], 0
          %s239 = sshll.u32 %s6, 4
          %s240 = int_to_ptr.hbm [resolvable:$true] %s239
          %s241 = sshll.u32 [#allocation15], 4
          %s242 = int_to_ptr.vmem [resolvable:$true] %s241
          %244 = dma.hbm_to_vmem [thread:$0]  %s240, 128, %s242, [#allocation14]
        $region20: #{tpu_custom_call.1} parent=11 // pred_fallthru
          _
      $region12: #{tpu_custom_call.1} parent=5 // pred_fallthru
        _
      %p245 = scmp.lt.s32.totalorder %s36, 2
      // Predicated region
      $region21: #{tpu_custom_call.1} parent=5 // pred_check
        %p246 = pneg %p245
      $region22: #{tpu_custom_call.1} parent=5 // pred_check_branch
        %248 = sbr.rel (%p246) target = $region24
      $region23: #{tpu_custom_call.1} parent=5 // pred_region
        // Predicated region
        $region25: #{tpu_custom_call.1} parent=23 // pred_check
          %p249 = pneg %p68
        $region26: #{tpu_custom_call.1} parent=23 // pred_check_branch
          %251 = sbr.rel (%p249) target = $region28
        $region27: #{tpu_custom_call.1} parent=23 // pred_region
          %s252 = sand.u32 %s58, 1
          %s253 = scalar_lea.sflag [#allocation8], %s252
          %s254 = sand.u32 %s58, 1
          %s255 = smul.addr %s254, 48
          %s256 = scalar_lea.vmem [#allocation7], %s255
          %s257 = smul.u32 6, %s43
          %259 = vsyncadd %s253, 0
          %s260 = smul.addr %s257, 8
          %s261 = scalar_lea.hbm %s2, %s260
          %s262 = sshll.u32 %s261, 4
          %s263 = int_to_ptr.hbm [resolvable:$true] %s262
          %s264 = sshll.u32 %s256, 4
          %s265 = int_to_ptr.vmem [resolvable:$true] %s264
          %270 = dma.hbm_to_vmem [thread:$0]  %s263, 768, %s265, %s253, 128, 128, 8
        $region28: #{tpu_custom_call.1} parent=23 // pred_fallthru
          _
        // Predicated region
        $region29: #{tpu_custom_call.1} parent=23 // pred_check
          %p271 = pneg %p100
        $region30: #{tpu_custom_call.1} parent=23 // pred_check_branch
          %273 = sbr.rel (%p271) target = $region32
        $region31: #{tpu_custom_call.1} parent=23 // pred_region
          %s274 = sand.u32 %s36, 1
          %s275 = scalar_lea.sflag [#allocation11], %s274
          %s276 = sand.u32 %s90, 1
          %s277 = smul.addr %s276, 48
          %s278 = scalar_lea.vmem [#allocation10], %s277
          %s279 = sadd.s32 %s43, %s44
          %s280 = sld [smem:[#allocation5 + %s279]]
          %s281 = smul.u32 6, %s43
          %283 = vsyncadd %s275, 0
          %s284 = sadd.s32 %s280, %s281
          %s285 = smul.addr %s284, 8
          %s286 = scalar_lea.hbm %s3, %s285
          %s287 = sshll.u32 %s286, 4
          %s288 = int_to_ptr.hbm [resolvable:$true] %s287
          %s289 = sshll.u32 %s278, 4
          %s290 = int_to_ptr.vmem [resolvable:$true] %s289
          %295 = dma.hbm_to_vmem [thread:$0]  %s288, 768, %s290, %s275, 128, 128, 8
        $region32: #{tpu_custom_call.1} parent=23 // pred_fallthru
          _
        // Predicated region
        $region33: #{tpu_custom_call.1} parent=23 // pred_check
          %p296 = pneg %p130
        $region34: #{tpu_custom_call.1} parent=23 // pred_check_branch
          %298 = sbr.rel (%p296) target = $region36
        $region35: #{tpu_custom_call.1} parent=23 // pred_region
          %s299 = sand.u32 %s36, 1
          %s300 = scalar_lea.sflag [#allocation11], %s299
          %s301 = sand.u32 %s120, 1
          %s302 = smul.addr %s301, 128
          %s303 = scalar_lea.vmem [#allocation12], %s302
          %s304 = sadd.s32 %s43, %s44
          %s305 = sld [smem:[#allocation5 + %s304]]
          %s306 = smul.u32 16, %s305
          %308 = vsyncadd %s300, 0
          %s309 = smul.addr %s306, 8
          %s310 = scalar_lea.hbm %s4, %s309
          %s311 = sshll.u32 %s310, 4
          %s312 = int_to_ptr.hbm [resolvable:$true] %s311
          %s313 = sshll.u32 %s303, 4
          %s314 = int_to_ptr.vmem [resolvable:$true] %s313
          %319 = dma.hbm_to_vmem [thread:$0]  %s312, 2048, %s314, %s300, 128, 128, 8
        $region36: #{tpu_custom_call.1} parent=23 // pred_fallthru
          _
      $region24: #{tpu_custom_call.1} parent=5 // pred_fallthru
        _
      %p320 = scmp.le.s32.totalorder 1, %s36
      %p321 = scmp.lt.s32.totalorder %s36, 3
      %p322 = pnand %p320, %p321
      %p323 = pneg %p322
      // Predicated region
      $region37: #{tpu_custom_call.1} parent=5 // pred_check
        _
      $region38: #{tpu_custom_call.1} parent=5 // pred_check_branch
        %325 = sbr.rel (%p322) target = $region40
      $region39: #{tpu_custom_call.1} parent=5 // pred_region
        %s326 = ssub.s32 %s36, 1
        %s327 = sand.u32 %s61, 1
        %s328 = scalar_lea.sflag [#allocation8], %s327
        %s329 = sand.u32 %s61, 1
        %s330 = smul.addr %s329, 48
        %s331 = scalar_lea.vmem [#allocation7], %s330
        // Predicated region
        $region41: #{tpu_custom_call.1} parent=39 // pred_check
          %p332 = pneg %p74
        $region42: #{tpu_custom_call.1} parent=39 // pred_check_branch
          %334 = sbr.rel (%p332) target = $region44
        $region43: #{tpu_custom_call.1} parent=39 // pred_region
          %336 = dma.done %s328, 768
        $region44: #{tpu_custom_call.1} parent=39 // pred_fallthru
          _
        %s337 = sand.u32 %s41, 1
        %s338 = scalar_lea.sflag [#allocation11], %s337
        %s339 = sand.u32 %s93, 1
        %s340 = smul.addr %s339, 48
        %s341 = scalar_lea.vmem [#allocation10], %s340
        // Predicated region
        $region45: #{tpu_custom_call.1} parent=39 // pred_check
          %p342 = pneg %p106
        $region46: #{tpu_custom_call.1} parent=39 // pred_check_branch
          %344 = sbr.rel (%p342) target = $region48
        $region47: #{tpu_custom_call.1} parent=39 // pred_region
          %346 = dma.done %s338, 768
        $region48: #{tpu_custom_call.1} parent=39 // pred_fallthru
          _
        %s347 = sand.u32 %s41, 1
        %s348 = scalar_lea.sflag [#allocation11], %s347
        %s349 = sand.u32 %s123, 1
        %s350 = smul.addr %s349, 128
        %s351 = scalar_lea.vmem [#allocation12], %s350
        // Predicated region
        $region49: #{tpu_custom_call.1} parent=39 // pred_check
          %p352 = pneg %p136
        $region50: #{tpu_custom_call.1} parent=39 // pred_check_branch
          %354 = sbr.rel (%p352) target = $region52
        $region51: #{tpu_custom_call.1} parent=39 // pred_region
          %356 = dma.done %s348, 2048
        $region52: #{tpu_custom_call.1} parent=39 // pred_fallthru
          _
        // Predicated region
        $region53: #{tpu_custom_call.1} parent=39 // pred_check
          %p357 = pneg %p157
        $region54: #{tpu_custom_call.1} parent=39 // pred_check_branch
          %359 = sbr.rel (%p357) target = $region56
        $region55: #{tpu_custom_call.1} parent=39 // pred_region
          %361 = dma.done [#allocation14], 4096
        $region56: #{tpu_custom_call.1} parent=39 // pred_fallthru
          _
        // Predicated region
        $region57: #{tpu_custom_call.1} parent=39 // pred_check
          %p362 = pneg %p178
        $region58: #{tpu_custom_call.1} parent=39 // pred_check_branch
          %364 = sbr.rel (%p362) target = $region60
        $region59: #{tpu_custom_call.1} parent=39 // pred_region
          %366 = dma.done [#allocation14], 128
        $region60: #{tpu_custom_call.1} parent=39 // pred_fallthru
          _
        %s367 = sand.u32 %s61, 1
        %s368 = scalar_lea.sflag [#allocation8], %s367
        %s369 = sand.u32 %s61, 1
        %s370 = smul.addr %s369, 48
        %s371 = scalar_lea.vmem [#allocation7], %s370
        %p372 = pneg %p74
        %p373 = pneg %p71
        %s374 = sand.u32 %s41, 1
        %s375 = scalar_lea.sflag [#allocation11], %s374
        %s376 = sand.u32 %s93, 1
        %s377 = smul.addr %s376, 48
        %s378 = scalar_lea.vmem [#allocation10], %s377
        %p379 = pneg %p106
        %p380 = pneg %p103
        %s381 = sand.u32 %s41, 1
        %s382 = scalar_lea.sflag [#allocation11], %s381
        %s383 = sand.u32 %s123, 1
        %s384 = smul.addr %s383, 128
        %s385 = scalar_lea.vmem [#allocation12], %s384
        %p386 = pneg %p136
        %p387 = pneg %p133
        %p388 = pneg %p157
        %p389 = pneg %p154
        %p390 = pneg %p178
        %p391 = pneg %p175
        %p392 = pneg %p204
        %p393 = pneg %p201
        %s394 = sand.u32 %s191, 1
        %s395 = scalar_lea.sflag [#allocation9], %s394
        %s396 = sand.u32 %s191, 1
        %s397 = smul.addr %s396, 48
        %s398 = scalar_lea.vmem [#allocation16], %s397
        %s399 = smul.u32 6, %s45
        %s400 = sadd.s32 %s45, %s46
        %s401 = sld [smem:[#allocation5 + %s400]]
        %s402 = smul.u32 6, %s45
        %s403 = sadd.s32 %s45, %s46
        %s404 = sld [smem:[#allocation5 + %s403]]
        %s405 = smul.u32 16, %s404
        %s406 = smul.u32 6, %s45
        %p407 = scmp.eq.s32.totalorder %s46, 0
        // Predicated region
        $region61: #{tpu_custom_call.1} parent=39 // pred_check
          %p408 = pneg %p407
        $region62: #{tpu_custom_call.1} parent=39 // pred_check_branch
          %410 = sbr.rel (%p408) target = $region64
        $region63: #{tpu_custom_call.1} parent=39 // pred_region
          %411 = vst [vmem:[#allocation2] sm:$0xff] 0.0
          %412 = vst [vmem:[#allocation2 + $0x8] sm:$0xff] 0.0
          %413 = vst [vmem:[#allocation2 + $0x10] sm:$0xff] 0.0
          %414 = vst [vmem:[#allocation2 + $0x18] sm:$0xff] 0.0
          %415 = vst [vmem:[#allocation2 + $0x20] sm:$0xff] 0.0
          %416 = vst [vmem:[#allocation2 + $0x28] sm:$0xff] 0.0
          %vm417 = vcmask 7168
          %418 = vst.msk [vmem:[#allocation3] sm:$0xff] %vm417, 0.0
          %419 = vst.msk [vmem:[#allocation3 + $0x8] sm:$0xff] %vm417, 0.0
          %420 = vst.msk [vmem:[#allocation3 + $0x10] sm:$0xff] %vm417, 0.0
          %421 = vst.msk [vmem:[#allocation3 + $0x18] sm:$0xff] %vm417, 0.0
          %422 = vst.msk [vmem:[#allocation3 + $0x20] sm:$0xff] %vm417, 0.0
          %423 = vst.msk [vmem:[#allocation3 + $0x28] sm:$0xff] %vm417, 0.0
        $region64: #{tpu_custom_call.1} parent=39 // pred_fallthru
          _
        %s424 = sld [smem:[#allocation6 + %s45]]
        %p425 = scmp.lt.s32.totalorder %s46, %s424
        // Predicated region
        $region65: #{tpu_custom_call.1} parent=39 // pred_check
          %p426 = pneg %p425
        $region66: #{tpu_custom_call.1} parent=39 // pred_check_branch
          %428 = sbr.rel (%p426) target = $region68
        $region67: #{tpu_custom_call.1} parent=39 // pred_region
          %v429 = vld [vmem:[%s341] sm:$0xff]
          %v430 = vld [vmem:[%s341 + $0x8] sm:$0xff]
          %v431 = vld [vmem:[%s341 + $0x10] sm:$0xff]
          %v432 = vld [vmem:[%s341 + $0x18] sm:$0xff]
          %v433 = vld [vmem:[%s341 + $0x20] sm:$0xff]
          %v434 = vld [vmem:[%s341 + $0x28] sm:$0xff]
          %v435 = vld [vmem:[#allocation2] sm:$0xff]
          %v436 = vld [vmem:[#allocation2 + $0x8] sm:$0xff]
          %v437 = vld [vmem:[#allocation2 + $0x10] sm:$0xff]
          %v438 = vld [vmem:[#allocation2 + $0x18] sm:$0xff]
          %v439 = vld [vmem:[#allocation2 + $0x20] sm:$0xff]
          %v440 = vld [vmem:[#allocation2 + $0x28] sm:$0xff]
          %v441 = vld [vmem:[%s351] sm:$0xff]
          %v442 = vld [vmem:[%s351 + $0x8] sm:$0xff]
          %v443 = vld [vmem:[%s351 + $0x10] sm:$0xff]
          %v444 = vld [vmem:[%s351 + $0x18] sm:$0xff]
          %v445 = vld [vmem:[%s351 + $0x20] sm:$0xff]
          %v446 = vld [vmem:[%s351 + $0x28] sm:$0xff]
          %v447 = vld [vmem:[%s351 + $0x30] sm:$0xff]
          %v448 = vld [vmem:[%s351 + $0x38] sm:$0xff]
          %v449 = vld [vmem:[%s351 + $0x40] sm:$0xff]
          %v450 = vld [vmem:[%s351 + $0x48] sm:$0xff]
          %v451 = vld [vmem:[%s351 + $0x50] sm:$0xff]
          %v452 = vld [vmem:[%s351 + $0x58] sm:$0xff]
          %v453 = vld [vmem:[%s351 + $0x60] sm:$0xff]
          %v454 = vld [vmem:[%s351 + $0x68] sm:$0xff]
          %v455 = vld [vmem:[%s351 + $0x70] sm:$0xff]
          %v456 = vld [vmem:[%s351 + $0x78] sm:$0xff]
          %457 = vmatpush.msra.mxu0 %v456
          %458 = vmatpush.msra.mxu0 %v455
          %459 = vmatpush.msra.mxu0 %v454
          %460 = vmatpush.msra.mxu0 %v453
          %461 = vmatpush.msra.mxu0 %v452
          %462 = vmatpush.msra.mxu0 %v451
          %463 = vmatpush.msra.mxu0 %v450
          %464 = vmatpush.msra.mxu0 %v449
          %465 = vmatpush.msra.mxu0 %v448
          %466 = vmatpush.msra.mxu0 %v447
          %467 = vmatpush.msra.mxu0 %v446
          %468 = vmatpush.msra.mxu0 %v445
          %469 = vmatpush.msra.mxu0 %v444
          %470 = vmatpush.msra.mxu0 %v443
          %471 = vmatpush.msra.mxu0 %v442
          %472 = vmatpush.msra.mxu0 %v441
          %473 = vmatmul.f32.gmra.mxu0 %v429
          %v474 = vpop.f32.mrf.mxu0
          %v475 = vadd.f32 0.0, %v474
          %476 = vmatmul.f32.gmra.mxu0 %v430
          %v477 = vpop.f32.mrf.mxu0
          %v478 = vadd.f32 0.0, %v477
          %479 = vmatmul.f32.gmra.mxu0 %v431
          %v480 = vpop.f32.mrf.mxu0
          %v481 = vadd.f32 0.0, %v480
          %482 = vmatmul.f32.gmra.mxu0 %v432
          %v483 = vpop.f32.mrf.mxu0
          %v484 = vadd.f32 0.0, %v483
          %485 = vmatmul.f32.gmra.mxu0 %v433
          %v486 = vpop.f32.mrf.mxu0
          %v487 = vadd.f32 0.0, %v486
          %488 = vmatmul.f32.gmra.mxu0 %v434
          %v489 = vpop.f32.mrf.mxu0
          %v490 = vadd.f32 0.0, %v489
          %491 = vdwg.mxu0
          %v492 = vadd.f32 %v435, %v475
          %v493 = vadd.f32 %v436, %v478
          %v494 = vadd.f32 %v437, %v481
          %v495 = vadd.f32 %v438, %v484
          %v496 = vadd.f32 %v439, %v487
          %v497 = vadd.f32 %v440, %v490
          %498 = vst [vmem:[#allocation2] sm:$0xff] %v492
          %499 = vst [vmem:[#allocation2 + $0x8] sm:$0xff] %v493
          %500 = vst [vmem:[#allocation2 + $0x10] sm:$0xff] %v494
          %501 = vst [vmem:[#allocation2 + $0x18] sm:$0xff] %v495
          %502 = vst [vmem:[#allocation2 + $0x20] sm:$0xff] %v496
          %503 = vst [vmem:[#allocation2 + $0x28] sm:$0xff] %v497
          %v504 = vld [vmem:[#allocation3] sm:$0xff]
          %v505 = vld [vmem:[#allocation3 + $0x8] sm:$0xff]
          %v506 = vld [vmem:[#allocation3 + $0x10] sm:$0xff]
          %v507 = vld [vmem:[#allocation3 + $0x18] sm:$0xff]
          %v508 = vld [vmem:[#allocation3 + $0x20] sm:$0xff]
          %v509 = vld [vmem:[#allocation3 + $0x28] sm:$0xff]
          %510 = vadd.xlane.f32.xlu0 %v429
          %v511 = vpop.xlane.xlu0 %510
          %512 = vadd.xlane.f32.xlu0 %v430
          %v513 = vpop.xlane.xlu0 %512
          %514 = vadd.xlane.f32.xlu0 %v431
          %v515 = vpop.xlane.xlu0 %514
          %516 = vadd.xlane.f32.xlu0 %v432
          %v517 = vpop.xlane.xlu0 %516
          %518 = vadd.xlane.f32.xlu0 %v433
          %v519 = vpop.xlane.xlu0 %518
          %520 = vadd.xlane.f32.xlu0 %v434
          %v521 = vpop.xlane.xlu0 %520
          %v522 = vadd.f32 %v504, %v511
          %v523 = vadd.f32 %v505, %v513
          %v524 = vadd.f32 %v506, %v515
          %v525 = vadd.f32 %v507, %v517
          %v526 = vadd.f32 %v508, %v519
          %v527 = vadd.f32 %v509, %v521
          %vm528 = vcmask 7168
          %529 = vst.msk [vmem:[#allocation3] sm:$0xff] %vm528, %v522
          %530 = vst.msk [vmem:[#allocation3 + $0x8] sm:$0xff] %vm528, %v523
          %531 = vst.msk [vmem:[#allocation3 + $0x10] sm:$0xff] %vm528, %v524
          %532 = vst.msk [vmem:[#allocation3 + $0x18] sm:$0xff] %vm528, %v525
          %533 = vst.msk [vmem:[#allocation3 + $0x20] sm:$0xff] %vm528, %v526
          %534 = vst.msk [vmem:[#allocation3 + $0x28] sm:$0xff] %vm528, %v527
        $region68: #{tpu_custom_call.1} parent=39 // pred_fallthru
          _
        // Predicated region
        $region69: #{tpu_custom_call.1} parent=39 // pred_check
          %p535 = pneg %p407
        $region70: #{tpu_custom_call.1} parent=39 // pred_check_branch
          %537 = sbr.rel (%p535) target = $region72
        $region71: #{tpu_custom_call.1} parent=39 // pred_region
          %v538 = vld [vmem:[%s331] sm:$0xff]
          %v539 = vld [vmem:[%s331 + $0x8] sm:$0xff]
          %v540 = vld [vmem:[%s331 + $0x10] sm:$0xff]
          %v541 = vld [vmem:[%s331 + $0x18] sm:$0xff]
          %v542 = vld [vmem:[%s331 + $0x20] sm:$0xff]
          %v543 = vld [vmem:[%s331 + $0x28] sm:$0xff]
          %v544 = vld [vmem:[#allocation2] sm:$0xff]
          %v545 = vld [vmem:[#allocation2 + $0x8] sm:$0xff]
          %v546 = vld [vmem:[#allocation2 + $0x10] sm:$0xff]
          %v547 = vld [vmem:[#allocation2 + $0x18] sm:$0xff]
          %v548 = vld [vmem:[#allocation2 + $0x20] sm:$0xff]
          %v549 = vld [vmem:[#allocation2 + $0x28] sm:$0xff]
          %v550 = vld [vmem:[#allocation3] sm:$0xff]
          %v551 = vld [vmem:[#allocation3 + $0x8] sm:$0xff]
          %v552 = vld [vmem:[#allocation3 + $0x10] sm:$0xff]
          %v553 = vld [vmem:[#allocation3 + $0x18] sm:$0xff]
          %v554 = vld [vmem:[#allocation3 + $0x20] sm:$0xff]
          %v555 = vld [vmem:[#allocation3 + $0x28] sm:$0xff]
          %v556 = vadd.f32 %v538, %v544
          %v557 = vadd.f32 %v539, %v545
          %v558 = vadd.f32 %v540, %v546
          %v559 = vadd.f32 %v541, %v547
          %v560 = vadd.f32 %v542, %v548
          %v561 = vadd.f32 %v543, %v549
          %v562 = vmul.f32 %v544, %v538
          %v563 = vmul.f32 %v545, %v539
          %v564 = vmul.f32 %v546, %v540
          %v565 = vmul.f32 %v547, %v541
          %v566 = vmul.f32 %v548, %v542
          %v567 = vmul.f32 %v549, %v543
          %v568 = vld [vmem:[#allocation13] sm:$0xff]
          %v569 = vld [vmem:[#allocation13 + $0x8] sm:$0xff]
          %v570 = vld [vmem:[#allocation13 + $0x10] sm:$0xff]
          %v571 = vld [vmem:[#allocation13 + $0x18] sm:$0xff]
          %v572 = vld [vmem:[#allocation13 + $0x20] sm:$0xff]
          %v573 = vld [vmem:[#allocation13 + $0x28] sm:$0xff]
          %v574 = vld [vmem:[#allocation13 + $0x30] sm:$0xff]
          %v575 = vld [vmem:[#allocation13 + $0x38] sm:$0xff]
          %v576 = vld [vmem:[#allocation13 + $0x40] sm:$0xff]
          %v577 = vld [vmem:[#allocation13 + $0x48] sm:$0xff]
          %v578 = vld [vmem:[#allocation13 + $0x50] sm:$0xff]
          %v579 = vld [vmem:[#allocation13 + $0x58] sm:$0xff]
          %v580 = vld [vmem:[#allocation13 + $0x60] sm:$0xff]
          %v581 = vld [vmem:[#allocation13 + $0x68] sm:$0xff]
          %v582 = vld [vmem:[#allocation13 + $0x70] sm:$0xff]
          %v583 = vld [vmem:[#allocation13 + $0x78] sm:$0xff]
          %v584 = vld [vmem:[#allocation13 + $0x80] sm:$0xff]
          %v585 = vld [vmem:[#allocation13 + $0x88] sm:$0xff]
          %v586 = vld [vmem:[#allocation13 + $0x90] sm:$0xff]
          %v587 = vld [vmem:[#allocation13 + $0x98] sm:$0xff]
          %v588 = vld [vmem:[#allocation13 + $0xa0] sm:$0xff]
          %v589 = vld [vmem:[#allocation13 + $0xa8] sm:$0xff]
          %v590 = vld [vmem:[#allocation13 + $0xb0] sm:$0xff]
          %v591 = vld [vmem:[#allocation13 + $0xb8] sm:$0xff]
          %v592 = vld [vmem:[#allocation13 + $0xc0] sm:$0xff]
          %v593 = vld [vmem:[#allocation13 + $0xc8] sm:$0xff]
          %v594 = vld [vmem:[#allocation13 + $0xd0] sm:$0xff]
          %v595 = vld [vmem:[#allocation13 + $0xd8] sm:$0xff]
          %v596 = vld [vmem:[#allocation13 + $0xe0] sm:$0xff]
          %v597 = vld [vmem:[#allocation13 + $0xe8] sm:$0xff]
          %v598 = vld [vmem:[#allocation13 + $0xf0] sm:$0xff]
          %v599 = vld [vmem:[#allocation13 + $0xf8] sm:$0xff]
          %v600 = vld [vmem:[#allocation15] sm:$0x1]
          %v601 = vperm.slane %v600, 0
          %602 = vmatpush.msra.mxu0 %v583
          %603 = vmatpush.msra.mxu0 %v582
          %604 = vmatpush.msra.mxu0 %v581
          %605 = vmatpush.msra.mxu0 %v580
          %606 = vmatpush.msra.mxu0 %v579
          %607 = vmatpush.msra.mxu0 %v578
          %608 = vmatpush.msra.mxu0 %v577
          %609 = vmatpush.msra.mxu0 %v576
          %610 = vmatpush.msra.mxu0 %v575
          %611 = vmatpush.msra.mxu0 %v574
          %612 = vmatpush.msra.mxu0 %v573
          %613 = vmatpush.msra.mxu0 %v572
          %614 = vmatpush.msra.mxu0 %v571
          %615 = vmatpush.msra.mxu0 %v570
          %616 = vmatpush.msra.mxu0 %v569
          %617 = vmatpush.msra.mxu0 %v568
          %618 = vmatmul.f32.gmra.mxu0 %v556
          %v619 = vpop.f32.mrf.mxu0
          %v620 = vadd.f32 %v601, %v619
          %621 = vmatmul.f32.gmra.mxu0 %v557
          %v622 = vpop.f32.mrf.mxu0
          %v623 = vadd.f32 %v601, %v622
          %624 = vmatmul.f32.gmra.mxu0 %v558
          %v625 = vpop.f32.mrf.mxu0
          %v626 = vadd.f32 %v601, %v625
          %627 = vmatmul.f32.gmra.mxu0 %v559
          %v628 = vpop.f32.mrf.mxu0
          %v629 = vadd.f32 %v601, %v628
          %630 = vmatmul.f32.gmra.mxu0 %v560
          %v631 = vpop.f32.mrf.mxu0
          %v632 = vadd.f32 %v601, %v631
          %633 = vmatmul.f32.gmra.mxu0 %v561
          %v634 = vpop.f32.mrf.mxu0
          %v635 = vadd.f32 %v601, %v634
          %636 = vdwg.mxu0
          %637 = vmatpush.msra.mxu0 %v599
          %638 = vmatpush.msra.mxu0 %v598
          %639 = vmatpush.msra.mxu0 %v597
          %640 = vmatpush.msra.mxu0 %v596
          %641 = vmatpush.msra.mxu0 %v595
          %642 = vmatpush.msra.mxu0 %v594
          %643 = vmatpush.msra.mxu0 %v593
          %644 = vmatpush.msra.mxu0 %v592
          %645 = vmatpush.msra.mxu0 %v591
          %646 = vmatpush.msra.mxu0 %v590
          %647 = vmatpush.msra.mxu0 %v589
          %648 = vmatpush.msra.mxu0 %v588
          %649 = vmatpush.msra.mxu0 %v587
          %650 = vmatpush.msra.mxu0 %v586
          %651 = vmatpush.msra.mxu0 %v585
          %652 = vmatpush.msra.mxu0 %v584
          %653 = vmatmul.f32.gmra.mxu0 %v562
          %v654 = vpop.f32.mrf.mxu0
          %v655 = vadd.f32 %v620, %v654
          %656 = vmatmul.f32.gmra.mxu0 %v563
          %v657 = vpop.f32.mrf.mxu0
          %v658 = vadd.f32 %v623, %v657
          %659 = vmatmul.f32.gmra.mxu0 %v564
          %v660 = vpop.f32.mrf.mxu0
          %v661 = vadd.f32 %v626, %v660
          %662 = vmatmul.f32.gmra.mxu0 %v565
          %v663 = vpop.f32.mrf.mxu0
          %v664 = vadd.f32 %v629, %v663
          %665 = vmatmul.f32.gmra.mxu0 %v566
          %v666 = vpop.f32.mrf.mxu0
          %v667 = vadd.f32 %v632, %v666
          %668 = vmatmul.f32.gmra.mxu0 %v567
          %v669 = vpop.f32.mrf.mxu0
          %v670 = vadd.f32 %v635, %v669
          %671 = vdwg.mxu0
          %v672 = vld [vmem:[#allocation15 + $0x1] sm:$0x1]
          %674 = vset.pattern.permute.xlu0 0
          %675 = vperm.xlu0 %674, %v550
          %v676 = vpop.permute.xlu0 %675
          %679 = vset.pattern.permute.xlu0 0
          %680 = vperm.xlu0 %679, %v551
          %v681 = vpop.permute.xlu0 %680
          %684 = vset.pattern.permute.xlu0 0
          %685 = vperm.xlu0 %684, %v552
          %v686 = vpop.permute.xlu0 %685
          %689 = vset.pattern.permute.xlu0 0
          %690 = vperm.xlu0 %689, %v553
          %v691 = vpop.permute.xlu0 %690
          %694 = vset.pattern.permute.xlu0 0
          %695 = vperm.xlu0 %694, %v554
          %v696 = vpop.permute.xlu0 %695
          %699 = vset.pattern.permute.xlu0 0
          %700 = vperm.xlu0 %699, %v555
          %v701 = vpop.permute.xlu0 %700
          %v703 = vperm.slane %v672, 0
          %v704 = vmul.f32 %v676, %v703
          %v705 = vmul.f32 %v681, %v703
          %v706 = vmul.f32 %v686, %v703
          %v707 = vmul.f32 %v691, %v703
          %v708 = vmul.f32 %v696, %v703
          %v709 = vmul.f32 %v701, %v703
          %v710 = vadd.f32 %v655, %v704
          %v711 = vadd.f32 %v658, %v705
          %v712 = vadd.f32 %v661, %v706
          %v713 = vadd.f32 %v664, %v707
          %v714 = vadd.f32 %v667, %v708
          %v715 = vadd.f32 %v670, %v709
          %vm716 = vcmp.gt.f32.partialorder %v710, 0.0
          %vm717 = vcmp.gt.f32.partialorder %v711, 0.0
          %vm718 = vcmp.gt.f32.partialorder %v712, 0.0
          %vm719 = vcmp.gt.f32.partialorder %v713, 0.0
          %vm720 = vcmp.gt.f32.partialorder %v714, 0.0
          %vm721 = vcmp.gt.f32.partialorder %v715, 0.0
          %v722 = vmul.f32 %v710, 0.2
          %v723 = vmul.f32 %v711, 0.2
          %v724 = vmul.f32 %v712, 0.2
          %v725 = vmul.f32 %v713, 0.2
          %v726 = vmul.f32 %v714, 0.2
          %v727 = vmul.f32 %v715, 0.2
          %v728 = vsel %vm716, %v710, %v722
          %v729 = vsel %vm717, %v711, %v723
          %v730 = vsel %vm718, %v712, %v724
          %v731 = vsel %vm719, %v713, %v725
          %v732 = vsel %vm720, %v714, %v726
          %v733 = vsel %vm721, %v715, %v727
          %v734 = vmul.f32 %v728, %v728
          %v735 = vmul.f32 %v729, %v729
          %v736 = vmul.f32 %v730, %v730
          %v737 = vmul.f32 %v731, %v731
          %v738 = vmul.f32 %v732, %v732
          %v739 = vmul.f32 %v733, %v733
          %740 = vadd.xlane.f32.xlu0 %v734
          %v741 = vpop.xlane.xlu0 %740
          %742 = vadd.xlane.f32.xlu0 %v735
          %v743 = vpop.xlane.xlu0 %742
          %744 = vadd.xlane.f32.xlu0 %v736
          %v745 = vpop.xlane.xlu0 %744
          %746 = vadd.xlane.f32.xlu0 %v737
          %v747 = vpop.xlane.xlu0 %746
          %748 = vadd.xlane.f32.xlu0 %v738
          %v749 = vpop.xlane.xlu0 %748
          %750 = vadd.xlane.f32.xlu0 %v739
          %v751 = vpop.xlane.xlu0 %750
          %v752 = vmax.f32 %v741, 1e-24
          %v753 = vmax.f32 %v743, 1e-24
          %v754 = vmax.f32 %v745, 1e-24
          %v755 = vmax.f32 %v747, 1e-24
          %v756 = vmax.f32 %v749, 1e-24
          %v757 = vmax.f32 %v751, 1e-24
          %v758 = vrsqrt.pop %v752
          %v759 = vmul.f32 %v758, %v752
          %v760 = vmul.f32 %v759, %v758
          %v761 = vmul.f32 0.5, %v760
          %v762 = vsub.f32 1.5, %v761
          %v763 = vmul.f32 %v758, %v762
          %vm764 = vweird.f32 %v752
          %vm765 = vweird.f32 %v758
          %vm766 = vmor %vm764, %vm765
          %v767 = vsel %vm766, %v758, %v763
          %v768 = vrsqrt.pop %v753
          %v769 = vmul.f32 %v768, %v753
          %v770 = vmul.f32 %v769, %v768
          %v771 = vmul.f32 0.5, %v770
          %v772 = vsub.f32 1.5, %v771
          %v773 = vmul.f32 %v768, %v772
          %vm774 = vweird.f32 %v753
          %vm775 = vweird.f32 %v768
          %vm776 = vmor %vm774, %vm775
          %v777 = vsel %vm776, %v768, %v773
          %v778 = vrsqrt.pop %v754
          %v779 = vmul.f32 %v778, %v754
          %v780 = vmul.f32 %v779, %v778
          %v781 = vmul.f32 0.5, %v780
          %v782 = vsub.f32 1.5, %v781
          %v783 = vmul.f32 %v778, %v782
          %vm784 = vweird.f32 %v754
          %vm785 = vweird.f32 %v778
          %vm786 = vmor %vm784, %vm785
          %v787 = vsel %vm786, %v778, %v783
          %v788 = vrsqrt.pop %v755
          %v789 = vmul.f32 %v788, %v755
          %v790 = vmul.f32 %v789, %v788
          %v791 = vmul.f32 0.5, %v790
          %v792 = vsub.f32 1.5, %v791
          %v793 = vmul.f32 %v788, %v792
          %vm794 = vweird.f32 %v755
          %vm795 = vweird.f32 %v788
          %vm796 = vmor %vm794, %vm795
          %v797 = vsel %vm796, %v788, %v793
          %v798 = vrsqrt.pop %v756
          %v799 = vmul.f32 %v798, %v756
          %v800 = vmul.f32 %v799, %v798
          %v801 = vmul.f32 0.5, %v800
          %v802 = vsub.f32 1.5, %v801
          %v803 = vmul.f32 %v798, %v802
          %vm804 = vweird.f32 %v756
          %vm805 = vweird.f32 %v798
          %vm806 = vmor %vm804, %vm805
          %v807 = vsel %vm806, %v798, %v803
          %v808 = vrsqrt.pop %v757
          %v809 = vmul.f32 %v808, %v757
          %v810 = vmul.f32 %v809, %v808
          %v811 = vmul.f32 0.5, %v810
          %v812 = vsub.f32 1.5, %v811
          %v813 = vmul.f32 %v808, %v812
          %vm814 = vweird.f32 %v757
          %vm815 = vweird.f32 %v808
          %vm816 = vmor %vm814, %vm815
          %v817 = vsel %vm816, %v808, %v813
          %v818 = vmul.f32 %v728, %v767
          %v819 = vmul.f32 %v729, %v777
          %v820 = vmul.f32 %v730, %v787
          %v821 = vmul.f32 %v731, %v797
          %v822 = vmul.f32 %v732, %v807
          %v823 = vmul.f32 %v733, %v817
          %824 = vst [vmem:[%s398] sm:$0xff] %v818
          %825 = vst [vmem:[%s398 + $0x8] sm:$0xff] %v819
          %826 = vst [vmem:[%s398 + $0x10] sm:$0xff] %v820
          %827 = vst [vmem:[%s398 + $0x18] sm:$0xff] %v821
          %828 = vst [vmem:[%s398 + $0x20] sm:$0xff] %v822
          %829 = vst [vmem:[%s398 + $0x28] sm:$0xff] %v823
        $region72: #{tpu_custom_call.1} parent=39 // pred_fallthru
          _
        %s830 = sand.u32 %s191, 1
        %s831 = scalar_lea.sflag [#allocation9], %s830
        %s832 = sand.u32 %s191, 1
        %s833 = smul.addr %s832, 48
        %s834 = scalar_lea.vmem [#allocation16], %s833
        // Predicated region
        $region73: #{tpu_custom_call.1} parent=39 // pred_check
          %p835 = pneg %p201
        $region74: #{tpu_custom_call.1} parent=39 // pred_check_branch
          %837 = sbr.rel (%p835) target = $region76
        $region75: #{tpu_custom_call.1} parent=39 // pred_region
          %s838 = smul.u32 6, %s45
          %840 = vsyncadd %s831, 0
          %s841 = smul.addr %s838, 8
          %s842 = scalar_lea.hbm %s7, %s841
          %s843 = sshll.u32 %s834, 4
          %s844 = int_to_ptr.vmem [resolvable:$true] %s843
          %s845 = sshll.u32 %s842, 4
          %s846 = int_to_ptr.hbm [resolvable:$true] %s845
          %851 = dma.vmem_to_hbm [thread:$0]  %s844, 768, %s846, %s831, 128, 128, 8
        $region76: #{tpu_custom_call.1} parent=39 // pred_fallthru
          _
      $region40: #{tpu_custom_call.1} parent=5 // pred_fallthru
        _
      %p852 = scmp.le.s32.totalorder 2, %s36
      // Predicated region
      $region77: #{tpu_custom_call.1} parent=5 // pred_check
        %p853 = pneg %p852
      $region78: #{tpu_custom_call.1} parent=5 // pred_check_branch
        %855 = sbr.rel (%p853) target = $region80
      $region79: #{tpu_custom_call.1} parent=5 // pred_region
        %s856 = ssub.s32 %s36, 2
        // Predicated region
        $region81: #{tpu_custom_call.1} parent=79 // pred_check
          %p857 = pneg %p207
        $region82: #{tpu_custom_call.1} parent=79 // pred_check_branch
          %859 = sbr.rel (%p857) target = $region84
        $region83: #{tpu_custom_call.1} parent=79 // pred_region
          %s860 = sand.u32 %s192, 1
          %s861 = scalar_lea.sflag [#allocation9], %s860
          %s862 = sand.u32 %s192, 1
          %s863 = smul.addr %s862, 48
          %s864 = scalar_lea.vmem [#allocation16], %s863
          %866 = dma.done %s861, 768
        $region84: #{tpu_custom_call.1} parent=79 // pred_fallthru
          _
      $region80: #{tpu_custom_call.1} parent=5 // pred_fallthru
        _
    $region6: #{tpu_custom_call.1} parent=1 // loop_footer
      %s40 = sadd.s32 1, %s36
    $region7: #{tpu_custom_call.1} parent=1 // loop_footer_branch
      %35 = sbr.rel target = $region3
    $region8: #{tpu_custom_call.1} parent=1 // loop_exit
      _
    %867 = vsyncpa [#allocation8], 1
    %s868 = scalar_lea.sflag [#allocation8], 1
    %869 = vsyncpa %s868, 1
    %870 = vsyncpa [#allocation11], 1
    %s871 = scalar_lea.sflag [#allocation11], 1
    %872 = vsyncpa %s871, 1
    %873 = vsyncpa [#allocation14], 1
    %874 = vsyncpa [#allocation9], 1
    %s875 = scalar_lea.sflag [#allocation9], 1
    %876 = vsyncpa %s875, 1

</llo_original>
